<compile_context>
chip_gen: v5e
topology: v5e:2x2
jax: 0.10.0
libtpu: 0.0.40
codegen_flags: <defaults>
</compile_context>

<pallas_src>
import functools

import jax
import jax.numpy as jnp
from jax.experimental import pallas as pl
from jax.experimental.pallas import tpu as pltpu


_CHANNELS = (3, 64, 128, 256, 512)   # per-layer Cin; final Cout = z_dim
_CIN_PAD = 8                         # input channel dim padded 3 -> 8 (regular layout)


def _round_up(x, m):
    return ((x + m - 1) // m) * m


def _cdiv(a, b):
    return -(-a // b)


def _encoder_kernel(x_ref,
                    w1_ref, b1_ref, w2_ref, b2_ref, w3_ref, b3_ref,
                    w4_ref, b4_ref, w5_ref, b5_ref,
                    o_ref, *, tb, tn, n_points):
    """One (batch-tile, point-tile) step of the 5-layer 1x1-conv MLP + max-pool."""
    nt = pl.program_id(1)
    m = tb * tn

    # (TB, TN, 8) -> (TB*TN, 8): fuse batch and point rows to fill the matmul M dim.
    x = x_ref[...].reshape(m, _CIN_PAD)                               # f32

    # ---- Layer 1 on the VPU --------------------------------------------------
    # A K=3, N=64 matmul wastes ~95% of a 256x256 MXU pass; three lane-broadcast
    # multiply-adds on the VPU are cheaper and free up MXU time.
    acc = x[:, 0:1] * w1_ref[0:1, :]
    acc = acc + x[:, 1:2] * w1_ref[1:2, :]
    acc = acc + x[:, 2:3] * w1_ref[2:3, :]
    h = jnp.maximum(acc + b1_ref[...], 0.0).astype(jnp.bfloat16)      # (M, 64)

    # ---- Layers 2-5 on the MXU (bf16 x bf16, f32 accumulation) ---------------
    def mxu_layer(h, w_ref, b_ref, out_dtype):
        y = jnp.dot(h, w_ref[...], preferred_element_type=jnp.float32)
        y = jnp.maximum(y + b_ref[...], 0.0)
        return y.astype(out_dtype)

    h = mxu_layer(h, w2_ref, b2_ref, jnp.bfloat16)                    # (M, 128)
    h = mxu_layer(h, w3_ref, b3_ref, jnp.bfloat16)                    # (M, 256)
    h = mxu_layer(h, w4_ref, b4_ref, jnp.bfloat16)                    # (M, 512)
    h = mxu_layer(h, w5_ref, b5_ref, jnp.float32)                     # (M, z_pad)

    z_pad = h.shape[-1]
    h = h.reshape(tb, tn, z_pad)

    # Mask padded point rows before pooling (trace-time no-op when TN divides N).
    # Masking with 0 is safe: the module's final ReLU guarantees real rows >= 0.
    if n_points % tn != 0:
        point_idx = nt * tn + jax.lax.broadcasted_iota(jnp.int32, (tb, tn, 1), 1)
        h = jnp.where(point_idx < n_points, h, 0.0)

    tile_max = jnp.max(h, axis=1)[:, None, :]                         # (TB, 1, z_pad)

    # Running max accumulates directly into the resident output block: its index
    # map is constant over nt, so it stays in VMEM across the whole reduction
    # axis (no scratch accumulator, no extra copy).
    @pl.when(nt == 0)
    def _():
        o_ref[...] = tile_max

    @pl.when(nt > 0)
    def _():
        o_ref[...] = jnp.maximum(o_ref[...], tile_max)


def _choose_tiles(B, N, z_pad):
    """Pick (batch_tile, point_tile).

    Target M = tb*tn rows per grid step: large enough (~2048-4096) to amortize
    the ~0.35 us per-step overhead, while keeping the widest f32 intermediate
    (M x max(512, z_pad)) around 8 MiB so tiles fit comfortably even on v7x's
    64 MiB physical VMEM.
    """
    m_target = (8 << 20) // (4 * max(512, z_pad))
    m_target = max(256, min(4096, m_target))

    n16 = _round_up(N, 16)          # bf16 sublane tile -> keep point tile 16-aligned
    if n16 <= m_target:
        tn = n16
    else:
        n_tiles = _cdiv(n16, m_target)
        tn = _round_up(_cdiv(n16, n_tiles), 16)

    tb = max(1, min(B, m_target // max(tn, 1)))
    return tb, tn


def encoder_forward(x_ncw, params):
    """x_ncw: (B, 3, x_dim) float32, PyTorch NCW layout. Returns (B, 1, z_dim) f32."""
    (w1, b1), (w2, b2), (w3, b3), (w4, b4), (w5, b5) = params
    B, cin, N = x_ncw.shape
    assert cin == 3
    z_dim = w5.shape[1]
    z_pad = _round_up(z_dim, 128)          # lane-dense output / accumulator

    tb, tn = _choose_tiles(B, N, z_pad)
    b_pad = _round_up(B, tb)
    n_pad = _round_up(N, tn)

    # Layout glue (cheap XLA work): NCW -> points-major, pad channels 3 -> 8 for a
    # regular block layout, pad batch/points to tile multiples. Input stays f32
    # (layer 1 runs on the VPU in f32; DMA volume is negligible vs compute).
    x = jnp.transpose(x_ncw, (0, 2, 1)).astype(jnp.float32)             # (B, N, 3)
    x = jnp.pad(x, ((0, b_pad - B), (0, n_pad - N), (0, _CIN_PAD - cin)))

    w5p = jnp.pad(w5, ((0, 0), (0, z_pad - z_dim)))
    b5p = jnp.pad(b5, ((0, 0), (0, z_pad - z_dim)))

    weights = [w1.astype(jnp.float32)] + [
        w.astype(jnp.bfloat16) for w in (w2, w3, w4, w5p)]
    biases = [b.astype(jnp.float32) for b in (b1, b2, b3, b4, b5p)]

    grid = (b_pad // tb, n_pad // tn)

    in_specs = [pl.BlockSpec((tb, tn, _CIN_PAD), lambda bt, nt: (bt, nt, 0))]
    flat_inputs = [x]
    for w, b in zip(weights, biases):
        # Whole (small) parameter resident in VMEM; constant block index, so its
        # DMA only happens on the first grid step.
        in_specs.append(pl.BlockSpec(w.shape, lambda bt, nt: (0, 0)))
        in_specs.append(pl.BlockSpec(b.shape, lambda bt, nt: (0, 0)))
        flat_inputs += [w, b]

    out_specs = pl.BlockSpec((tb, 1, z_pad), lambda bt, nt: (bt, 0, 0))

    dims = list(_CHANNELS) + [z_dim]
    flops = 2 * B * N * sum(dims[i] * dims[i + 1] for i in range(5))
    bytes_accessed = (x.size * 4
                      + weights[0].size * 4
                      + sum(w.size * 2 for w in weights[1:])
                      + sum(b.size * 4 for b in biases)
                      + b_pad * z_pad * 4)

    kernel = functools.partial(_encoder_kernel, tb=tb, tn=tn, n_points=N)

    out = pl.pallas_call(
        kernel,
        out_shape=jax.ShapeDtypeStruct((b_pad, 1, z_pad), jnp.float32),
        grid_spec=pltpu.PrefetchScalarGridSpec(
            num_scalar_prefetch=0,
            grid=grid,
            in_specs=in_specs,
            out_specs=out_specs,
        ),
        compiler_params=pltpu.CompilerParams(
            dimension_semantics=("parallel", "arbitrary"),
            vmem_limit_bytes=48 * 1024 * 1024,
        ),
        cost_estimate=pl.CostEstimate(
            flops=flops, transcendentals=0, bytes_accessed=int(bytes_accessed)),
    )(*flat_inputs)

    return out[:B, :, :z_dim]                                           # (B, 1, z_dim)


def init_params(key, z_dim):
    """Deterministic synthetic params. Weights stored as (Cin, Cout) so the
    kernel computes h @ W (equivalent to PyTorch Conv1d kernel_size=1 weight
    of shape (Cout, Cin, 1))."""
    dims = list(_CHANNELS) + [z_dim]
    params = []
    for i in range(5):
        cin, cout = dims[i], dims[i + 1]
        key, kw, kb = jax.random.split(key, 3)
        bound = 1.0 / jnp.sqrt(cin)
        w = jax.random.uniform(kw, (cin, cout), jnp.float32, -bound, bound)
        b = jax.random.uniform(kb, (1, cout), jnp.float32, -bound, bound)
        params.append((w, b))
    return params


def encoder_reference(x_ncw, params):
    """Pure-JAX f32 reference mirroring the PyTorch forward."""
    h = jnp.transpose(x_ncw, (0, 2, 1))                                  # (B, N, 3)
    for w, b in params:
        h = jnp.maximum(h @ w + b, 0.0)
    return jnp.max(h, axis=1, keepdims=True)                             # (B, 1, z_dim)


if __name__ == "__main__":
    key = jax.random.PRNGKey(0)
    B, x_dim, z_dim = 2, 16, 32

    kx, kp = jax.random.split(key)
    x = jax.random.normal(kx, (B, 3, x_dim), jnp.float32)                # PyTorch NCW input
    params = init_params(kp, z_dim)

    out = jax.block_until_ready(encoder_forward(x, params))
    ref = encoder_reference(x, params)

    assert out.shape == (B, 1, z_dim), out.shape
    # bf16 weights/activations on layers 2-5 (f32 accumulation) -> relaxed tolerance.
    assert jnp.allclose(out, ref, atol=2e-2, rtol=2e-2), "mismatch vs reference"

    print("KERNEL_OK")
</pallas_src>

<mosaic_0001>
module attributes {stable_mosaic.version = 11 : i64} {
  func.func @_encoder_kernel(%arg0: i32, %arg1: i32, %arg2: memref<2x16x8xf32, #tpu.memory_space<vmem>>, %arg3: memref<3x64xf32, #tpu.memory_space<vmem>>, %arg4: memref<1x64xf32, #tpu.memory_space<vmem>>, %arg5: memref<64x128xbf16, #tpu.memory_space<vmem>>, %arg6: memref<1x128xf32, #tpu.memory_space<vmem>>, %arg7: memref<128x256xbf16, #tpu.memory_space<vmem>>, %arg8: memref<1x256xf32, #tpu.memory_space<vmem>>, %arg9: memref<256x512xbf16, #tpu.memory_space<vmem>>, %arg10: memref<1x512xf32, #tpu.memory_space<vmem>>, %arg11: memref<512x128xbf16, #tpu.memory_space<vmem>>, %arg12: memref<1x128xf32, #tpu.memory_space<vmem>>, %arg13: memref<2x1x128xf32, #tpu.memory_space<vmem>>) attributes {dimension_semantics = [#tpu.dimension_semantics<parallel>, #tpu.dimension_semantics<arbitrary>], iteration_bounds = array<i64: 1, 1>, scalar_prefetch = 0 : i64, scratch_operands = 0 : i64, tpu.core_type = #tpu.core_type<tc>, window_params = [{transform_indices = @transform_0, window_bounds = array<i64: 2, 16, 8>}, {pipeline_mode = #tpu.pipeline_mode<synchronous>, transform_indices = @transform_1, window_bounds = array<i64: 3, 64>}, {pipeline_mode = #tpu.pipeline_mode<synchronous>, transform_indices = @transform_2, window_bounds = array<i64: 1, 64>}, {pipeline_mode = #tpu.pipeline_mode<synchronous>, transform_indices = @transform_3, window_bounds = array<i64: 64, 128>}, {pipeline_mode = #tpu.pipeline_mode<synchronous>, transform_indices = @transform_4, window_bounds = array<i64: 1, 128>}, {pipeline_mode = #tpu.pipeline_mode<synchronous>, transform_indices = @transform_5, window_bounds = array<i64: 128, 256>}, {pipeline_mode = #tpu.pipeline_mode<synchronous>, transform_indices = @transform_6, window_bounds = array<i64: 1, 256>}, {pipeline_mode = #tpu.pipeline_mode<synchronous>, transform_indices = @transform_7, window_bounds = array<i64: 256, 512>}, {pipeline_mode = #tpu.pipeline_mode<synchronous>, transform_indices = @transform_8, window_bounds = array<i64: 1, 512>}, {pipeline_mode = #tpu.pipeline_mode<synchronous>, transform_indices = @transform_9, window_bounds = array<i64: 512, 128>}, {pipeline_mode = #tpu.pipeline_mode<synchronous>, transform_indices = @transform_10, window_bounds = array<i64: 1, 128>}, {transform_indices = @transform_11, window_bounds = array<i64: 2, 1, 128>}]} {
    %c0 = arith.constant 0 : index
    %c0_0 = arith.constant 0 : index
    %c0_1 = arith.constant 0 : index
    %0 = vector.load %arg2[%c0, %c0_0, %c0_1] : memref<2x16x8xf32, #tpu.memory_space<vmem>>, vector<2x16x8xf32>
    %1 = vector.shape_cast %0 : vector<2x16x8xf32> to vector<32x8xf32>
    %2 = vector.extract_strided_slice %1 {offsets = [0, 0], sizes = [32, 1], strides = [1, 1]} : vector<32x8xf32> to vector<32x1xf32>
    %c0_2 = arith.constant 0 : index
    %c0_3 = arith.constant 0 : index
    %3 = vector.load %arg3[%c0_2, %c0_3] : memref<3x64xf32, #tpu.memory_space<vmem>>, vector<1x64xf32>
    %4 = vector.broadcast %2 : vector<32x1xf32> to vector<32x64xf32>
    %5 = vector.broadcast %3 : vector<1x64xf32> to vector<32x64xf32>
    %6 = arith.mulf %4, %5 : vector<32x64xf32>
    %7 = vector.extract_strided_slice %1 {offsets = [0, 1], sizes = [32, 1], strides = [1, 1]} : vector<32x8xf32> to vector<32x1xf32>
    %c1 = arith.constant 1 : index
    %c0_4 = arith.constant 0 : index
    %8 = vector.load %arg3[%c1, %c0_4] : memref<3x64xf32, #tpu.memory_space<vmem>>, vector<1x64xf32>
    %9 = vector.broadcast %7 : vector<32x1xf32> to vector<32x64xf32>
    %10 = vector.broadcast %8 : vector<1x64xf32> to vector<32x64xf32>
    %11 = arith.mulf %9, %10 : vector<32x64xf32>
    %12 = arith.addf %6, %11 : vector<32x64xf32>
    %13 = vector.extract_strided_slice %1 {offsets = [0, 2], sizes = [32, 1], strides = [1, 1]} : vector<32x8xf32> to vector<32x1xf32>
    %c2 = arith.constant 2 : index
    %c0_5 = arith.constant 0 : index
    %14 = vector.load %arg3[%c2, %c0_5] : memref<3x64xf32, #tpu.memory_space<vmem>>, vector<1x64xf32>
    %15 = vector.broadcast %13 : vector<32x1xf32> to vector<32x64xf32>
    %16 = vector.broadcast %14 : vector<1x64xf32> to vector<32x64xf32>
    %17 = arith.mulf %15, %16 : vector<32x64xf32>
    %18 = arith.addf %12, %17 : vector<32x64xf32>
    %c0_6 = arith.constant 0 : index
    %c0_7 = arith.constant 0 : index
    %19 = vector.load %arg4[%c0_6, %c0_7] : memref<1x64xf32, #tpu.memory_space<vmem>>, vector<1x64xf32>
    %20 = vector.broadcast %19 : vector<1x64xf32> to vector<32x64xf32>
    %21 = arith.addf %18, %20 : vector<32x64xf32>
    %cst = arith.constant 0.000000e+00 : f32
    %22 = vector.broadcast %cst : f32 to vector<32x64xf32>
    %23 = arith.maximumf %21, %22 : vector<32x64xf32>
    %24 = arith.truncf %23 : vector<32x64xf32> to vector<32x64xbf16>
    %c0_8 = arith.constant 0 : index
    %c0_9 = arith.constant 0 : index
    %25 = vector.load %arg5[%c0_8, %c0_9] : memref<64x128xbf16, #tpu.memory_space<vmem>>, vector<64x128xbf16>
    %cst_10 = arith.constant dense<0.000000e+00> : vector<32x128xf32>
    %26 = tpu.matmul %24, %25, %cst_10 {dimension_numbers = #tpu.dot_dimension_numbers<[1], [0], [0], [1], [0, 0, 1, 1], [], []>} : vector<32x64xbf16>, vector<64x128xbf16>, vector<32x128xf32> -> vector<32x128xf32>
    %c0_11 = arith.constant 0 : index
    %c0_12 = arith.constant 0 : index
    %27 = vector.load %arg6[%c0_11, %c0_12] : memref<1x128xf32, #tpu.memory_space<vmem>>, vector<1x128xf32>
    %28 = vector.broadcast %27 : vector<1x128xf32> to vector<32x128xf32>
    %29 = arith.addf %26, %28 : vector<32x128xf32>
    %cst_13 = arith.constant 0.000000e+00 : f32
    %30 = vector.broadcast %cst_13 : f32 to vector<32x128xf32>
    %31 = arith.maximumf %29, %30 : vector<32x128xf32>
    %32 = arith.truncf %31 : vector<32x128xf32> to vector<32x128xbf16>
    %c0_14 = arith.constant 0 : index
    %c0_15 = arith.constant 0 : index
    %33 = vector.load %arg7[%c0_14, %c0_15] : memref<128x256xbf16, #tpu.memory_space<vmem>>, vector<128x256xbf16>
    %cst_16 = arith.constant dense<0.000000e+00> : vector<32x256xf32>
    %34 = tpu.matmul %32, %33, %cst_16 {dimension_numbers = #tpu.dot_dimension_numbers<[1], [0], [0], [1], [0, 0, 1, 1], [], []>} : vector<32x128xbf16>, vector<128x256xbf16>, vector<32x256xf32> -> vector<32x256xf32>
    %c0_17 = arith.constant 0 : index
    %c0_18 = arith.constant 0 : index
    %35 = vector.load %arg8[%c0_17, %c0_18] : memref<1x256xf32, #tpu.memory_space<vmem>>, vector<1x256xf32>
    %36 = vector.broadcast %35 : vector<1x256xf32> to vector<32x256xf32>
    %37 = arith.addf %34, %36 : vector<32x256xf32>
    %cst_19 = arith.constant 0.000000e+00 : f32
    %38 = vector.broadcast %cst_19 : f32 to vector<32x256xf32>
    %39 = arith.maximumf %37, %38 : vector<32x256xf32>
    %40 = arith.truncf %39 : vector<32x256xf32> to vector<32x256xbf16>
    %c0_20 = arith.constant 0 : index
    %c0_21 = arith.constant 0 : index
    %41 = vector.load %arg9[%c0_20, %c0_21] : memref<256x512xbf16, #tpu.memory_space<vmem>>, vector<256x512xbf16>
    %cst_22 = arith.constant dense<0.000000e+00> : vector<32x512xf32>
    %42 = tpu.matmul %40, %41, %cst_22 {dimension_numbers = #tpu.dot_dimension_numbers<[1], [0], [0], [1], [0, 0, 1, 1], [], []>} : vector<32x256xbf16>, vector<256x512xbf16>, vector<32x512xf32> -> vector<32x512xf32>
    %c0_23 = arith.constant 0 : index
    %c0_24 = arith.constant 0 : index
    %43 = vector.load %arg10[%c0_23, %c0_24] : memref<1x512xf32, #tpu.memory_space<vmem>>, vector<1x512xf32>
    %44 = vector.broadcast %43 : vector<1x512xf32> to vector<32x512xf32>
    %45 = arith.addf %42, %44 : vector<32x512xf32>
    %cst_25 = arith.constant 0.000000e+00 : f32
    %46 = vector.broadcast %cst_25 : f32 to vector<32x512xf32>
    %47 = arith.maximumf %45, %46 : vector<32x512xf32>
    %48 = arith.truncf %47 : vector<32x512xf32> to vector<32x512xbf16>
    %c0_26 = arith.constant 0 : index
    %c0_27 = arith.constant 0 : index
    %49 = vector.load %arg11[%c0_26, %c0_27] : memref<512x128xbf16, #tpu.memory_space<vmem>>, vector<512x128xbf16>
    %cst_28 = arith.constant dense<0.000000e+00> : vector<32x128xf32>
    %50 = tpu.matmul %48, %49, %cst_28 {dimension_numbers = #tpu.dot_dimension_numbers<[1], [0], [0], [1], [0, 0, 1, 1], [], []>} : vector<32x512xbf16>, vector<512x128xbf16>, vector<32x128xf32> -> vector<32x128xf32>
    %c0_29 = arith.constant 0 : index
    %c0_30 = arith.constant 0 : index
    %51 = vector.load %arg12[%c0_29, %c0_30] : memref<1x128xf32, #tpu.memory_space<vmem>>, vector<1x128xf32>
    %52 = vector.broadcast %51 : vector<1x128xf32> to vector<32x128xf32>
    %53 = arith.addf %50, %52 : vector<32x128xf32>
    %cst_31 = arith.constant 0.000000e+00 : f32
    %54 = vector.broadcast %cst_31 : f32 to vector<32x128xf32>
    %55 = arith.maximumf %53, %54 : vector<32x128xf32>
    %56 = vector.shape_cast %55 : vector<32x128xf32> to vector<2x16x128xf32>
    %cst_32 = arith.constant dense<0xFF800000> : vector<2x128xf32>
    %57 = vector.multi_reduction <maximumf>, %56, %cst_32 [1] : vector<2x16x128xf32> to vector<2x128xf32>
    %58 = vector.shape_cast %57 : vector<2x128xf32> to vector<2x1x128xf32>
    %c0_i32 = arith.constant 0 : i32
    %59 = arith.cmpi eq, %arg1, %c0_i32 : i32
    %60 = arith.extui %59 : i1 to i32
    %c0_i32_33 = arith.constant 0 : i32
    %61 = arith.cmpi ne, %60, %c0_i32_33 : i32
    scf.if %61 {
      %c0_36 = arith.constant 0 : index
      %c0_37 = arith.constant 0 : index
      %c0_38 = arith.constant 0 : index
      %65 = vector.load %arg13[%c0_36, %c0_37, %c0_38] : memref<2x1x128xf32, #tpu.memory_space<vmem>>, vector<2x1x128xf32>
      tpu.vector_store %arg13[%c0_36, %c0_37, %c0_38], %58 {strides = array<i32>} : memref<2x1x128xf32, #tpu.memory_space<vmem>>, vector<2x1x128xf32>,
    } else {
    }
    %c0_i32_34 = arith.constant 0 : i32
    %62 = arith.cmpi sgt, %arg1, %c0_i32_34 : i32
    %63 = arith.extui %62 : i1 to i32
    %c0_i32_35 = arith.constant 0 : i32
    %64 = arith.cmpi ne, %63, %c0_i32_35 : i32
    scf.if %64 {
      %c0_36 = arith.constant 0 : index
      %c0_37 = arith.constant 0 : index
      %c0_38 = arith.constant 0 : index
      %65 = vector.load %arg13[%c0_36, %c0_37, %c0_38] : memref<2x1x128xf32, #tpu.memory_space<vmem>>, vector<2x1x128xf32>
      %66 = arith.maximumf %65, %58 : vector<2x1x128xf32>
      %c0_39 = arith.constant 0 : index
      %c0_40 = arith.constant 0 : index
      %c0_41 = arith.constant 0 : index
      %67 = vector.load %arg13[%c0_39, %c0_40, %c0_41] : memref<2x1x128xf32, #tpu.memory_space<vmem>>, vector<2x1x128xf32>
      tpu.vector_store %arg13[%c0_39, %c0_40, %c0_41], %66 {strides = array<i32>} : memref<2x1x128xf32, #tpu.memory_space<vmem>>, vector<2x1x128xf32>,
    } else {
    }
    return
  }
  func.func @transform_0(%arg0: i32, %arg1: i32) -> (i32, i32, i32) {
    %c0_i32 = arith.constant 0 : i32
    %c0_i32_0 = arith.constant 0 : i32
    return %arg0, %arg1, %c0_i32 : i32, i32, i32
  }
  func.func @transform_1(%arg0: i32, %arg1: i32) -> (i32, i32) {
    %c0_i32 = arith.constant 0 : i32
    %c0_i32_0 = arith.constant 0 : i32
    %c0_i32_1 = arith.constant 0 : i32
    return %c0_i32, %c0_i32_0 : i32, i32
  }
  func.func @transform_2(%arg0: i32, %arg1: i32) -> (i32, i32) {
    %c0_i32 = arith.constant 0 : i32
    %c0_i32_0 = arith.constant 0 : i32
    %c0_i32_1 = arith.constant 0 : i32
    return %c0_i32, %c0_i32_0 : i32, i32
  }
  func.func @transform_3(%arg0: i32, %arg1: i32) -> (i32, i32) {
    %c0_i32 = arith.constant 0 : i32
    %c0_i32_0 = arith.constant 0 : i32
    %c0_i32_1 = arith.constant 0 : i32
    return %c0_i32, %c0_i32_0 : i32, i32
  }
  func.func @transform_4(%arg0: i32, %arg1: i32) -> (i32, i32) {
    %c0_i32 = arith.constant 0 : i32
    %c0_i32_0 = arith.constant 0 : i32
    %c0_i32_1 = arith.constant 0 : i32
    return %c0_i32, %c0_i32_0 : i32, i32
  }
  func.func @transform_5(%arg0: i32, %arg1: i32) -> (i32, i32) {
    %c0_i32 = arith.constant 0 : i32
    %c0_i32_0 = arith.constant 0 : i32
    %c0_i32_1 = arith.constant 0 : i32
    return %c0_i32, %c0_i32_0 : i32, i32
  }
  func.func @transform_6(%arg0: i32, %arg1: i32) -> (i32, i32) {
    %c0_i32 = arith.constant 0 : i32
    %c0_i32_0 = arith.constant 0 : i32
    %c0_i32_1 = arith.constant 0 : i32
    return %c0_i32, %c0_i32_0 : i32, i32
  }
  func.func @transform_7(%arg0: i32, %arg1: i32) -> (i32, i32) {
    %c0_i32 = arith.constant 0 : i32
    %c0_i32_0 = arith.constant 0 : i32
    %c0_i32_1 = arith.constant 0 : i32
    return %c0_i32, %c0_i32_0 : i32, i32
  }
  func.func @transform_8(%arg0: i32, %arg1: i32) -> (i32, i32) {
    %c0_i32 = arith.constant 0 : i32
    %c0_i32_0 = arith.constant 0 : i32
    %c0_i32_1 = arith.constant 0 : i32
    return %c0_i32, %c0_i32_0 : i32, i32
  }
  func.func @transform_9(%arg0: i32, %arg1: i32) -> (i32, i32) {
    %c0_i32 = arith.constant 0 : i32
    %c0_i32_0 = arith.constant 0 : i32
    %c0_i32_1 = arith.constant 0 : i32
    return %c0_i32, %c0_i32_0 : i32, i32
  }
  func.func @transform_10(%arg0: i32, %arg1: i32) -> (i32, i32) {
    %c0_i32 = arith.constant 0 : i32
    %c0_i32_0 = arith.constant 0 : i32
    %c0_i32_1 = arith.constant 0 : i32
    return %c0_i32, %c0_i32_0 : i32, i32
  }
  func.func @transform_11(%arg0: i32, %arg1: i32) -> (i32, i32, i32) {
    %c0_i32 = arith.constant 0 : i32
    %c0_i32_0 = arith.constant 0 : i32
    %c0_i32_1 = arith.constant 0 : i32
    return %arg0, %c0_i32, %c0_i32_0 : i32, i32, i32
  }
}

</mosaic_0001>

<llo_original>
// kernel: tpu_custom_call.1
$region0: #{tpu_custom_call.1}
  #allocation0 [shape = 'u32[]', space=smem, size = 0x4, offset = 0x4, fixed_abs, tag = 'smem constant byte address 0x4 - core index']
  #allocation1 [shape = 'u32[72,128]{1,0:T(1,128)}', space=vmem, size = 0x9000, scoped, tag = 'internal scratch']
  %s0 = inlined_call_operand.vmem [shape: f32[2,16,8], index: 0, kind: input, shape index: {}]
  %s1 = inlined_call_operand.vmem [shape: f32[3,64], index: 1, kind: input, shape index: {}]
  %s2 = inlined_call_operand.vmem [shape: f32[1,64], index: 2, kind: input, shape index: {}]
  %s3 = inlined_call_operand.vmem [shape: bf16[64,128], index: 3, kind: input, shape index: {}]
  %s4 = inlined_call_operand.vmem [shape: f32[1,128], index: 4, kind: input, shape index: {}]
  %s5 = inlined_call_operand.hbm [shape: bf16[128,256], index: 5, kind: input, shape index: {}]
  %s6 = inlined_call_operand.vmem [shape: f32[1,256], index: 6, kind: input, shape index: {}]
  %s7 = inlined_call_operand.hbm [shape: bf16[256,512], index: 7, kind: input, shape index: {}]
  %s8 = inlined_call_operand.vmem [shape: f32[1,512], index: 8, kind: input, shape index: {}]
  %s9 = inlined_call_operand.hbm [shape: bf16[512,128], index: 9, kind: input, shape index: {}]
  %s10 = inlined_call_operand.vmem [shape: f32[1,128], index: 10, kind: input, shape index: {}]
  %s11 = inlined_call_operand.hbm [shape: f32[2,1,128], index: 11, kind: output, shape index: {}]
  %s12 = sld [smem:[#allocation0]]
  $region74: #{tpu_custom_call.1} parent=0
    _
  %s14 = ssub.s32 1, %s12
  %s15 = scalar_select 0, %s14, %s12
  $region1: #{tpu_custom_call.1} parent=0
    #allocation2 [shape = 'u8[65536]{0}', space=vmem, size = 0x10000, scoped, tag = 'input window, operand 5, single buffered']
    #allocation3 [shape = 's32[1]{0}', space=sflag, size = 0x4, scoped, tag = 'scoped memory for tpu_custom_call.1']
    #allocation4 [shape = 's32[1]{0}', space=sflag, size = 0x4, scoped, tag = 'scoped memory for tpu_custom_call.1']
    #allocation5 [shape = 'u8[262144]{0}', space=vmem, size = 0x40000, scoped, tag = 'input window, operand 7, single buffered']
    #allocation6 [shape = 's32[1]{0}', space=sflag, size = 0x4, scoped, tag = 'scoped memory for tpu_custom_call.1']
    #allocation7 [shape = 'u8[131072]{0}', space=vmem, size = 0x20000, scoped, tag = 'input window, operand 9, single buffered']
    #allocation8 [shape = 'u8[1024]{0}', space=vmem, size = 0x400, scoped, tag = 'output window, operand 0, single buffered']
    %16 = vsyncpa [#allocation3], 0
    %17 = vsyncpa [#allocation6], 0
    %18 = vsyncpa [#allocation4], 0
    // Predicated region
    $region2: #{tpu_custom_call.1} parent=1 // pred_check
      _
    $region3: #{tpu_custom_call.1} parent=1 // pred_check_branch
      %20 = sbr.rel (0) target = $region5
    $region4: #{tpu_custom_call.1} parent=1 // pred_region
      _
    $region5: #{tpu_custom_call.1} parent=1 // pred_fallthru
      _
    // Predicated region
    $region6: #{tpu_custom_call.1} parent=1 // pred_check
      _
    $region7: #{tpu_custom_call.1} parent=1 // pred_check_branch
      %22 = sbr.rel (0) target = $region9
    $region8: #{tpu_custom_call.1} parent=1 // pred_region
      _
    $region9: #{tpu_custom_call.1} parent=1 // pred_fallthru
      _
    // Predicated region
    $region10: #{tpu_custom_call.1} parent=1 // pred_check
      _
    $region11: #{tpu_custom_call.1} parent=1 // pred_check_branch
      %24 = sbr.rel (0) target = $region13
    $region12: #{tpu_custom_call.1} parent=1 // pred_region
      _
    $region13: #{tpu_custom_call.1} parent=1 // pred_fallthru
      _
    // Predicated region
    $region14: #{tpu_custom_call.1} parent=1 // pred_check
      _
    $region15: #{tpu_custom_call.1} parent=1 // pred_check_branch
      %26 = sbr.rel (0) target = $region17
    $region16: #{tpu_custom_call.1} parent=1 // pred_region
      _
    $region17: #{tpu_custom_call.1} parent=1 // pred_fallthru
      _
    // Predicated region
    $region18: #{tpu_custom_call.1} parent=1 // pred_check
      _
    $region19: #{tpu_custom_call.1} parent=1 // pred_check_branch
      %28 = sbr.rel (0) target = $region21
    $region20: #{tpu_custom_call.1} parent=1 // pred_region
      _
    $region21: #{tpu_custom_call.1} parent=1 // pred_fallthru
      _
    // Predicated region
    $region22: #{tpu_custom_call.1} parent=1 // pred_check
      _
    $region23: #{tpu_custom_call.1} parent=1 // pred_check_branch
      %30 = sbr.rel (0) target = $region25
    $region24: #{tpu_custom_call.1} parent=1 // pred_region
      %32 = vsyncadd [#allocation3], 0
      %s33 = sshll.u32 %s5, 4
      %s34 = int_to_ptr.hbm [resolvable:$true] %s33
      %s35 = sshll.u32 [#allocation2], 4
      %s36 = int_to_ptr.vmem [resolvable:$true] %s35
      %41 = dma.hbm_to_vmem [thread:$0]  %s34, 2048, %s36, [#allocation3], 128, 128, 8
    $region25: #{tpu_custom_call.1} parent=1 // pred_fallthru
      _
    // Predicated region
    $region26: #{tpu_custom_call.1} parent=1 // pred_check
      _
    $region27: #{tpu_custom_call.1} parent=1 // pred_check_branch
      %43 = sbr.rel (0) target = $region29
    $region28: #{tpu_custom_call.1} parent=1 // pred_region
      _
    $region29: #{tpu_custom_call.1} parent=1 // pred_fallthru
      _
    // Predicated region
    $region30: #{tpu_custom_call.1} parent=1 // pred_check
      _
    $region31: #{tpu_custom_call.1} parent=1 // pred_check_branch
      %45 = sbr.rel (0) target = $region33
    $region32: #{tpu_custom_call.1} parent=1 // pred_region
      %47 = vsyncadd [#allocation6], 0
      %s48 = sshll.u32 %s7, 4
      %s49 = int_to_ptr.hbm [resolvable:$true] %s48
      %s50 = sshll.u32 [#allocation5], 4
      %s51 = int_to_ptr.vmem [resolvable:$true] %s50
      %56 = dma.hbm_to_vmem [thread:$0]  %s49, 8192, %s51, [#allocation6], 256, 256, 16
    $region33: #{tpu_custom_call.1} parent=1 // pred_fallthru
      _
    // Predicated region
    $region34: #{tpu_custom_call.1} parent=1 // pred_check
      _
    $region35: #{tpu_custom_call.1} parent=1 // pred_check_branch
      %58 = sbr.rel (0) target = $region37
    $region36: #{tpu_custom_call.1} parent=1 // pred_region
      _
    $region37: #{tpu_custom_call.1} parent=1 // pred_fallthru
      _
    // Predicated region
    $region38: #{tpu_custom_call.1} parent=1 // pred_check
      _
    $region39: #{tpu_custom_call.1} parent=1 // pred_check_branch
      %60 = sbr.rel (0) target = $region41
    $region40: #{tpu_custom_call.1} parent=1 // pred_region
      %62 = vsyncadd [#allocation6], 0
      %s63 = sshll.u32 %s9, 4
      %s64 = int_to_ptr.hbm [resolvable:$true] %s63
      %s65 = sshll.u32 [#allocation7], 4
      %s66 = int_to_ptr.vmem [resolvable:$true] %s65
      %71 = dma.hbm_to_vmem [thread:$0]  %s64, 4096, %s66, [#allocation6], 64, 64, 4
    $region41: #{tpu_custom_call.1} parent=1 // pred_fallthru
      _
    // Predicated region
    $region42: #{tpu_custom_call.1} parent=1 // pred_check
      _
    $region43: #{tpu_custom_call.1} parent=1 // pred_check_branch
      %73 = sbr.rel (0) target = $region45
    $region44: #{tpu_custom_call.1} parent=1 // pred_region
      _
    $region45: #{tpu_custom_call.1} parent=1 // pred_fallthru
      _
    // Predicated region
    $region46: #{tpu_custom_call.1} parent=1 // pred_check
      _
    $region47: #{tpu_custom_call.1} parent=1 // pred_check_branch
      %75 = sbr.rel (0) target = $region49
    $region48: #{tpu_custom_call.1} parent=1 // pred_region
      %77 = dma.done [#allocation3], 2048
    $region49: #{tpu_custom_call.1} parent=1 // pred_fallthru
      _
    // Predicated region
    $region50: #{tpu_custom_call.1} parent=1 // pred_check
      _
    $region51: #{tpu_custom_call.1} parent=1 // pred_check_branch
      %79 = sbr.rel (0) target = $region53
    $region52: #{tpu_custom_call.1} parent=1 // pred_region
      %81 = dma.done [#allocation6], 8192
    $region53: #{tpu_custom_call.1} parent=1 // pred_fallthru
      _
    // Predicated region
    $region54: #{tpu_custom_call.1} parent=1 // pred_check
      _
    $region55: #{tpu_custom_call.1} parent=1 // pred_check_branch
      %83 = sbr.rel (0) target = $region57
    $region56: #{tpu_custom_call.1} parent=1 // pred_region
      %85 = dma.done [#allocation6], 4096
    $region57: #{tpu_custom_call.1} parent=1 // pred_fallthru
      _
    %v87 = vld [vmem:[%s0] sm:$0xff]
    %v88 = vld [vmem:[%s0 + $0x8] sm:$0xff]
    %v89 = vld [vmem:[%s0 + $0x10] sm:$0xff]
    %v90 = vld [vmem:[%s0 + $0x18] sm:$0xff]
    %v91 = vld [vmem:[%s1] sm:$0x1]
    %93 = vset.pattern.permute.xlu0 0
    %94 = vperm.xlu0 %93, %v87
    %v95 = vpop.permute.xlu0 %94
    %98 = vset.pattern.permute.xlu0 0
    %99 = vperm.xlu0 %98, %v88
    %v100 = vpop.permute.xlu0 %99
    %103 = vset.pattern.permute.xlu0 0
    %104 = vperm.xlu0 %103, %v89
    %v105 = vpop.permute.xlu0 %104
    %108 = vset.pattern.permute.xlu0 0
    %109 = vperm.xlu0 %108, %v90
    %v110 = vpop.permute.xlu0 %109
    %v112 = vperm.slane %v91, 0
    %v113 = vmul.f32 %v95, %v112
    %v114 = vmul.f32 %v100, %v112
    %v115 = vmul.f32 %v105, %v112
    %v116 = vmul.f32 %v110, %v112
    %v117 = vld [vmem:[%s1 + $0x1] sm:$0x1]
    %118 = vset.pattern.permute.xlu0 1
    %119 = vperm.xlu0 %118, %v87
    %v120 = vpop.permute.xlu0 %119
    %122 = vset.pattern.permute.xlu0 1
    %123 = vperm.xlu0 %122, %v88
    %v124 = vpop.permute.xlu0 %123
    %126 = vset.pattern.permute.xlu0 1
    %127 = vperm.xlu0 %126, %v89
    %v128 = vpop.permute.xlu0 %127
    %130 = vset.pattern.permute.xlu0 1
    %131 = vperm.xlu0 %130, %v90
    %v132 = vpop.permute.xlu0 %131
    %v134 = vperm.slane %v117, 0
    %v135 = vmul.f32 %v120, %v134
    %v136 = vmul.f32 %v124, %v134
    %v137 = vmul.f32 %v128, %v134
    %v138 = vmul.f32 %v132, %v134
    %v139 = vadd.f32 %v113, %v135
    %v140 = vadd.f32 %v114, %v136
    %v141 = vadd.f32 %v115, %v137
    %v142 = vadd.f32 %v116, %v138
    %v143 = vld [vmem:[%s1 + $0x2] sm:$0x1]
    %144 = vset.pattern.permute.xlu0 2
    %145 = vperm.xlu0 %144, %v87
    %v146 = vpop.permute.xlu0 %145
    %148 = vset.pattern.permute.xlu0 2
    %149 = vperm.xlu0 %148, %v88
    %v150 = vpop.permute.xlu0 %149
    %152 = vset.pattern.permute.xlu0 2
    %153 = vperm.xlu0 %152, %v89
    %v154 = vpop.permute.xlu0 %153
    %156 = vset.pattern.permute.xlu0 2
    %157 = vperm.xlu0 %156, %v90
    %v158 = vpop.permute.xlu0 %157
    %v160 = vperm.slane %v143, 0
    %v161 = vmul.f32 %v146, %v160
    %v162 = vmul.f32 %v150, %v160
    %v163 = vmul.f32 %v154, %v160
    %v164 = vmul.f32 %v158, %v160
    %v165 = vadd.f32 %v139, %v161
    %v166 = vadd.f32 %v140, %v162
    %v167 = vadd.f32 %v141, %v163
    %v168 = vadd.f32 %v142, %v164
    %v169 = vld [vmem:[%s2] sm:$0x1]
    %v171 = vperm.slane %v169, 0
    %v173 = vadd.f32 %v165, %v171
    %v174 = vadd.f32 %v166, %v171
    %v175 = vadd.f32 %v167, %v171
    %v176 = vadd.f32 %v168, %v171
    %v177 = vmax.f32 %v173, 0.0
    %v178 = vmax.f32 %v174, 0.0
    %v179 = vmax.f32 %v175, 0.0
    %v180 = vmax.f32 %v176, 0.0
    %v181 = vpack.c.bf16 %v178, %v177
    %v182 = vpack.c.bf16 %v180, %v179
    %v183 = vld [vmem:[%s3] sm:$0xf]
    %v184 = vld [vmem:[%s3 + $0x4] sm:$0xf]
    %v185 = vld [vmem:[%s3 + $0x8] sm:$0xf]
    %v186 = vld [vmem:[%s3 + $0xc] sm:$0xf]
    %v187 = vld [vmem:[%s3 + $0x10] sm:$0xf]
    %v188 = vld [vmem:[%s3 + $0x14] sm:$0xf]
    %v189 = vld [vmem:[%s3 + $0x18] sm:$0xf]
    %v190 = vld [vmem:[%s3 + $0x1c] sm:$0xf]
    %v191 = vld [vmem:[%s4] sm:$0x1]
    %v193 = vperm.slane %v191, 0
    %v203 = vunpack.c.l.b16 %v183
    %v204 = vunpack.c.l.b16 %v184
    %v205 = vunpack.c.l.b16 %v185
    %v206 = vunpack.c.l.b16 %v186
    %v207 = vunpack.c.l.b16 %v187
    %v208 = vunpack.c.l.b16 %v188
    %v209 = vunpack.c.l.b16 %v189
    %v210 = vunpack.c.l.b16 %v190
    %v211 = vpack.c.b16 %v204, %v203
    %v212 = vpack.c.b16 %v206, %v205
    %v213 = vpack.c.b16 %v208, %v207
    %v214 = vpack.c.b16 %v210, %v209
    %vm219 = vcmask 523264
    %v221 = vsel %vm219, %v181, 0
    %v224 = vsel %vm219, %v182, 0
    %226 = vmatpush.bf16.msra.mxu0 0
    %227 = vmatpush.bf16.msra.mxu0 0
    %228 = vmatpush.bf16.msra.mxu0 0
    %229 = vmatpush.bf16.msra.mxu0 0
    %230 = vmatpush.bf16.msra.mxu0 %v214
    %231 = vmatpush.bf16.msra.mxu0 %v213
    %232 = vmatpush.bf16.msra.mxu0 %v212
    %233 = vmatpush.bf16.msra.mxu0 %v211
    %234 = vmatmul.bf16.gmra.mxu0 %v221
    %v235 = vpop.f32.mrf.mxu0
    %v236 = vadd.f32 %v193, %v235
    %v237 = vpop.f32.mrf.mxu0
    %v238 = vadd.f32 %v193, %v237
    %239 = vmatmul.bf16.gmra.mxu0 %v224
    %v240 = vpop.f32.mrf.mxu0
    %v241 = vadd.f32 %v193, %v240
    %v242 = vpop.f32.mrf.mxu0
    %v243 = vadd.f32 %v193, %v242
    %244 = vdwg.mxu0
    %v245 = vmax.f32 %v236, 0.0
    %v246 = vmax.f32 %v238, 0.0
    %v247 = vmax.f32 %v241, 0.0
    %v248 = vmax.f32 %v243, 0.0
    %v249 = vpack.c.bf16 %v246, %v245
    %v250 = vpack.c.bf16 %v248, %v247
    %v251 = vld [vmem:[#allocation2] sm:$0xff]
    %v252 = vld [vmem:[#allocation2 + $0x8] sm:$0xff]
    %v253 = vld [vmem:[#allocation2 + $0x10] sm:$0xff]
    %v254 = vld [vmem:[#allocation2 + $0x18] sm:$0xff]
    %v255 = vld [vmem:[#allocation2 + $0x20] sm:$0xff]
    %v256 = vld [vmem:[#allocation2 + $0x28] sm:$0xff]
    %v257 = vld [vmem:[#allocation2 + $0x30] sm:$0xff]
    %v258 = vld [vmem:[#allocation2 + $0x38] sm:$0xff]
    %v259 = vld [vmem:[#allocation2 + $0x40] sm:$0xff]
    %v260 = vld [vmem:[#allocation2 + $0x48] sm:$0xff]
    %v261 = vld [vmem:[#allocation2 + $0x50] sm:$0xff]
    %v262 = vld [vmem:[#allocation2 + $0x58] sm:$0xff]
    %v263 = vld [vmem:[#allocation2 + $0x60] sm:$0xff]
    %v264 = vld [vmem:[#allocation2 + $0x68] sm:$0xff]
    %v265 = vld [vmem:[#allocation2 + $0x70] sm:$0xff]
    %v266 = vld [vmem:[#allocation2 + $0x78] sm:$0xff]
    %v267 = vld [vmem:[%s6] sm:$0x3]
    %v269 = vperm.slane %v267, 0
    %v270 = vperm.slane %v267, 1
    %v289 = vunpack.c.l.b16 %v251
    %v290 = vunpack.c.h.b16 %v251
    %v291 = vunpack.c.l.b16 %v252
    %v292 = vunpack.c.h.b16 %v252
    %v293 = vunpack.c.l.b16 %v253
    %v294 = vunpack.c.h.b16 %v253
    %v295 = vunpack.c.l.b16 %v254
    %v296 = vunpack.c.h.b16 %v254
    %v297 = vunpack.c.l.b16 %v255
    %v298 = vunpack.c.h.b16 %v255
    %v299 = vunpack.c.l.b16 %v256
    %v300 = vunpack.c.h.b16 %v256
    %v301 = vunpack.c.l.b16 %v257
    %v302 = vunpack.c.h.b16 %v257
    %v303 = vunpack.c.l.b16 %v258
    %v304 = vunpack.c.h.b16 %v258
    %v305 = vunpack.c.l.b16 %v259
    %v306 = vunpack.c.h.b16 %v259
    %v307 = vunpack.c.l.b16 %v260
    %v308 = vunpack.c.h.b16 %v260
    %v309 = vunpack.c.l.b16 %v261
    %v310 = vunpack.c.h.b16 %v261
    %v311 = vunpack.c.l.b16 %v262
    %v312 = vunpack.c.h.b16 %v262
    %v313 = vunpack.c.l.b16 %v263
    %v314 = vunpack.c.h.b16 %v263
    %v315 = vunpack.c.l.b16 %v264
    %v316 = vunpack.c.h.b16 %v264
    %v317 = vunpack.c.l.b16 %v265
    %v318 = vunpack.c.h.b16 %v265
    %v319 = vunpack.c.l.b16 %v266
    %v320 = vunpack.c.h.b16 %v266
    %v321 = vpack.c.b16 %v291, %v289
    %v322 = vpack.c.b16 %v292, %v290
    %v323 = vpack.c.b16 %v295, %v293
    %v324 = vpack.c.b16 %v296, %v294
    %v325 = vpack.c.b16 %v299, %v297
    %v326 = vpack.c.b16 %v300, %v298
    %v327 = vpack.c.b16 %v303, %v301
    %v328 = vpack.c.b16 %v304, %v302
    %v329 = vpack.c.b16 %v307, %v305
    %v330 = vpack.c.b16 %v308, %v306
    %v331 = vpack.c.b16 %v311, %v309
    %v332 = vpack.c.b16 %v312, %v310
    %v333 = vpack.c.b16 %v315, %v313
    %v334 = vpack.c.b16 %v316, %v314
    %v335 = vpack.c.b16 %v319, %v317
    %v336 = vpack.c.b16 %v320, %v318
    %353 = vmatpush.bf16.msra.mxu0 %v335
    %354 = vmatpush.bf16.msra.mxu0 %v333
    %355 = vmatpush.bf16.msra.mxu0 %v331
    %356 = vmatpush.bf16.msra.mxu0 %v329
    %357 = vmatpush.bf16.msra.mxu0 %v327
    %358 = vmatpush.bf16.msra.mxu0 %v325
    %359 = vmatpush.bf16.msra.mxu0 %v323
    %360 = vmatpush.bf16.msra.mxu0 %v321
    %361 = vmatmul.bf16.gmra.mxu0 %v249
    %v362 = vpop.f32.mrf.mxu0
    %v363 = vadd.f32 %v269, %v362
    %v364 = vpop.f32.mrf.mxu0
    %v365 = vadd.f32 %v269, %v364
    %366 = vmatmul.bf16.gmra.mxu0 %v250
    %v367 = vpop.f32.mrf.mxu0
    %v368 = vadd.f32 %v269, %v367
    %v369 = vpop.f32.mrf.mxu0
    %v370 = vadd.f32 %v269, %v369
    %371 = vdwg.mxu0
    %372 = vmatpush.bf16.msra.mxu0 %v336
    %373 = vmatpush.bf16.msra.mxu0 %v334
    %374 = vmatpush.bf16.msra.mxu0 %v332
    %375 = vmatpush.bf16.msra.mxu0 %v330
    %376 = vmatpush.bf16.msra.mxu0 %v328
    %377 = vmatpush.bf16.msra.mxu0 %v326
    %378 = vmatpush.bf16.msra.mxu0 %v324
    %379 = vmatpush.bf16.msra.mxu0 %v322
    %380 = vmatmul.bf16.gmra.mxu0 %v249
    %v381 = vpop.f32.mrf.mxu0
    %v382 = vadd.f32 %v270, %v381
    %v383 = vpop.f32.mrf.mxu0
    %v384 = vadd.f32 %v270, %v383
    %385 = vmatmul.bf16.gmra.mxu0 %v250
    %v386 = vpop.f32.mrf.mxu0
    %v387 = vadd.f32 %v270, %v386
    %v388 = vpop.f32.mrf.mxu0
    %v389 = vadd.f32 %v270, %v388
    %390 = vdwg.mxu0
    %v391 = vmax.f32 %v363, 0.0
    %v392 = vmax.f32 %v382, 0.0
    %v393 = vmax.f32 %v365, 0.0
    %v394 = vmax.f32 %v384, 0.0
    %v395 = vmax.f32 %v368, 0.0
    %v396 = vmax.f32 %v387, 0.0
    %v397 = vmax.f32 %v370, 0.0
    %v398 = vmax.f32 %v389, 0.0
    %v399 = vpack.c.bf16 %v393, %v391
    %v400 = vpack.c.bf16 %v394, %v392
    %v401 = vpack.c.bf16 %v397, %v395
    %v402 = vpack.c.bf16 %v398, %v396
    %v403 = vld [vmem:[#allocation5] sm:$0xff]
    %v404 = vld [vmem:[#allocation5 + $0x8] sm:$0xff]
    %v405 = vld [vmem:[#allocation5 + $0x10] sm:$0xff]
    %v406 = vld [vmem:[#allocation5 + $0x18] sm:$0xff]
    %v407 = vld [vmem:[#allocation5 + $0x20] sm:$0xff]
    %v408 = vld [vmem:[#allocation5 + $0x28] sm:$0xff]
    %v409 = vld [vmem:[#allocation5 + $0x30] sm:$0xff]
    %v410 = vld [vmem:[#allocation5 + $0x38] sm:$0xff]
    %v411 = vld [vmem:[#allocation5 + $0x40] sm:$0xff]
    %v412 = vld [vmem:[#allocation5 + $0x48] sm:$0xff]
    %v413 = vld [vmem:[#allocation5 + $0x50] sm:$0xff]
    %v414 = vld [vmem:[#allocation5 + $0x58] sm:$0xff]
    %v415 = vld [vmem:[#allocation5 + $0x60] sm:$0xff]
    %v416 = vld [vmem:[#allocation5 + $0x68] sm:$0xff]
    %v417 = vld [vmem:[#allocation5 + $0x70] sm:$0xff]
    %v418 = vld [vmem:[#allocation5 + $0x78] sm:$0xff]
    %v419 = vld [vmem:[#allocation5 + $0x80] sm:$0xff]
    %v420 = vld [vmem:[#allocation5 + $0x88] sm:$0xff]
    %v421 = vld [vmem:[#allocation5 + $0x90] sm:$0xff]
    %v422 = vld [vmem:[#allocation5 + $0x98] sm:$0xff]
    %v423 = vld [vmem:[#allocation5 + $0xa0] sm:$0xff]
    %v424 = vld [vmem:[#allocation5 + $0xa8] sm:$0xff]
    %v425 = vld [vmem:[#allocation5 + $0xb0] sm:$0xff]
    %v426 = vld [vmem:[#allocation5 + $0xb8] sm:$0xff]
    %v427 = vld [vmem:[#allocation5 + $0xc0] sm:$0xff]
    %v428 = vld [vmem:[#allocation5 + $0xc8] sm:$0xff]
    %v429 = vld [vmem:[#allocation5 + $0xd0] sm:$0xff]
    %v430 = vld [vmem:[#allocation5 + $0xd8] sm:$0xff]
    %v431 = vld [vmem:[#allocation5 + $0xe0] sm:$0xff]
    %v432 = vld [vmem:[#allocation5 + $0xe8] sm:$0xff]
    %v433 = vld [vmem:[#allocation5 + $0xf0] sm:$0xff]
    %v434 = vld [vmem:[#allocation5 + $0xf8] sm:$0xff]
    %v435 = vld [vmem:[#allocation5 + $0x100] sm:$0xff]
    %v436 = vld [vmem:[#allocation5 + $0x108] sm:$0xff]
    %v437 = vld [vmem:[#allocation5 + $0x110] sm:$0xff]
    %v438 = vld [vmem:[#allocation5 + $0x118] sm:$0xff]
    %v439 = vld [vmem:[#allocation5 + $0x120] sm:$0xff]
    %v440 = vld [vmem:[#allocation5 + $0x128] sm:$0xff]
    %v441 = vld [vmem:[#allocation5 + $0x130] sm:$0xff]
    %v442 = vld [vmem:[#allocation5 + $0x138] sm:$0xff]
    %v443 = vld [vmem:[#allocation5 + $0x140] sm:$0xff]
    %v444 = vld [vmem:[#allocation5 + $0x148] sm:$0xff]
    %v445 = vld [vmem:[#allocation5 + $0x150] sm:$0xff]
    %v446 = vld [vmem:[#allocation5 + $0x158] sm:$0xff]
    %v447 = vld [vmem:[#allocation5 + $0x160] sm:$0xff]
    %v448 = vld [vmem:[#allocation5 + $0x168] sm:$0xff]
    %v449 = vld [vmem:[#allocation5 + $0x170] sm:$0xff]
    %v450 = vld [vmem:[#allocation5 + $0x178] sm:$0xff]
    %v451 = vld [vmem:[#allocation5 + $0x180] sm:$0xff]
    %v452 = vld [vmem:[#allocation5 + $0x188] sm:$0xff]
    %v453 = vld [vmem:[#allocation5 + $0x190] sm:$0xff]
    %v454 = vld [vmem:[#allocation5 + $0x198] sm:$0xff]
    %v455 = vld [vmem:[#allocation5 + $0x1a0] sm:$0xff]
    %v456 = vld [vmem:[#allocation5 + $0x1a8] sm:$0xff]
    %v457 = vld [vmem:[#allocation5 + $0x1b0] sm:$0xff]
    %v458 = vld [vmem:[#allocation5 + $0x1b8] sm:$0xff]
    %v459 = vld [vmem:[#allocation5 + $0x1c0] sm:$0xff]
    %v460 = vld [vmem:[#allocation5 + $0x1c8] sm:$0xff]
    %v461 = vld [vmem:[#allocation5 + $0x1d0] sm:$0xff]
    %v462 = vld [vmem:[#allocation5 + $0x1d8] sm:$0xff]
    %v463 = vld [vmem:[#allocation5 + $0x1e0] sm:$0xff]
    %v464 = vld [vmem:[#allocation5 + $0x1e8] sm:$0xff]
    %v465 = vld [vmem:[#allocation5 + $0x1f0] sm:$0xff]
    %v466 = vld [vmem:[#allocation5 + $0x1f8] sm:$0xff]
    %v467 = vld [vmem:[%s8] sm:$0xf]
    %v469 = vperm.slane %v467, 0
    %v470 = vperm.slane %v467, 1
    %v471 = vperm.slane %v467, 2
    %v472 = vperm.slane %v467, 3
    %v541 = vunpack.c.l.b16 %v403
    %v542 = vunpack.c.h.b16 %v403
    %v543 = vunpack.c.l.b16 %v404
    %v544 = vunpack.c.h.b16 %v404
    %v545 = vunpack.c.l.b16 %v405
    %v546 = vunpack.c.h.b16 %v405
    %v547 = vunpack.c.l.b16 %v406
    %v548 = vunpack.c.h.b16 %v406
    %v549 = vunpack.c.l.b16 %v407
    %v550 = vunpack.c.h.b16 %v407
    %v551 = vunpack.c.l.b16 %v408
    %v552 = vunpack.c.h.b16 %v408
    %v553 = vunpack.c.l.b16 %v409
    %v554 = vunpack.c.h.b16 %v409
    %v555 = vunpack.c.l.b16 %v410
    %v556 = vunpack.c.h.b16 %v410
    %v557 = vunpack.c.l.b16 %v411
    %v558 = vunpack.c.h.b16 %v411
    %v559 = vunpack.c.l.b16 %v412
    %v560 = vunpack.c.h.b16 %v412
    %v561 = vunpack.c.l.b16 %v413
    %v562 = vunpack.c.h.b16 %v413
    %v563 = vunpack.c.l.b16 %v414
    %v564 = vunpack.c.h.b16 %v414
    %v565 = vunpack.c.l.b16 %v415
    %v566 = vunpack.c.h.b16 %v415
    %v567 = vunpack.c.l.b16 %v416
    %v568 = vunpack.c.h.b16 %v416
    %v569 = vunpack.c.l.b16 %v417
    %v570 = vunpack.c.h.b16 %v417
    %v571 = vunpack.c.l.b16 %v418
    %v572 = vunpack.c.h.b16 %v418
    %v573 = vunpack.c.l.b16 %v419
    %v574 = vunpack.c.h.b16 %v419
    %v575 = vunpack.c.l.b16 %v420
    %v576 = vunpack.c.h.b16 %v420
    %v577 = vunpack.c.l.b16 %v421
    %v578 = vunpack.c.h.b16 %v421
    %v579 = vunpack.c.l.b16 %v422
    %v580 = vunpack.c.h.b16 %v422
    %v581 = vunpack.c.l.b16 %v423
    %v582 = vunpack.c.h.b16 %v423
    %v583 = vunpack.c.l.b16 %v424
    %v584 = vunpack.c.h.b16 %v424
    %v585 = vunpack.c.l.b16 %v425
    %v586 = vunpack.c.h.b16 %v425
    %v587 = vunpack.c.l.b16 %v426
    %v588 = vunpack.c.h.b16 %v426
    %v589 = vunpack.c.l.b16 %v427
    %v590 = vunpack.c.h.b16 %v427
    %v591 = vunpack.c.l.b16 %v428
    %v592 = vunpack.c.h.b16 %v428
    %v593 = vunpack.c.l.b16 %v429
    %v594 = vunpack.c.h.b16 %v429
    %v595 = vunpack.c.l.b16 %v430
    %v596 = vunpack.c.h.b16 %v430
    %v597 = vunpack.c.l.b16 %v431
    %v598 = vunpack.c.h.b16 %v431
    %v599 = vunpack.c.l.b16 %v432
    %v600 = vunpack.c.h.b16 %v432
    %v601 = vunpack.c.l.b16 %v433
    %v602 = vunpack.c.h.b16 %v433
    %v603 = vunpack.c.l.b16 %v434
    %v604 = vunpack.c.h.b16 %v434
    %v605 = vunpack.c.l.b16 %v435
    %v606 = vunpack.c.h.b16 %v435
    %v607 = vunpack.c.l.b16 %v436
    %v608 = vunpack.c.h.b16 %v436
    %v609 = vunpack.c.l.b16 %v437
    %v610 = vunpack.c.h.b16 %v437
    %v611 = vunpack.c.l.b16 %v438
    %v612 = vunpack.c.h.b16 %v438
    %v613 = vunpack.c.l.b16 %v439
    %v614 = vunpack.c.h.b16 %v439
    %v615 = vunpack.c.l.b16 %v440
    %v616 = vunpack.c.h.b16 %v440
    %v617 = vunpack.c.l.b16 %v441
    %v618 = vunpack.c.h.b16 %v441
    %v619 = vunpack.c.l.b16 %v442
    %v620 = vunpack.c.h.b16 %v442
    %v621 = vunpack.c.l.b16 %v443
    %v622 = vunpack.c.h.b16 %v443
    %v623 = vunpack.c.l.b16 %v444
    %v624 = vunpack.c.h.b16 %v444
    %v625 = vunpack.c.l.b16 %v445
    %v626 = vunpack.c.h.b16 %v445
    %v627 = vunpack.c.l.b16 %v446
    %v628 = vunpack.c.h.b16 %v446
    %v629 = vunpack.c.l.b16 %v447
    %v630 = vunpack.c.h.b16 %v447
    %v631 = vunpack.c.l.b16 %v448
    %v632 = vunpack.c.h.b16 %v448
    %v633 = vunpack.c.l.b16 %v449
    %v634 = vunpack.c.h.b16 %v449
    %v635 = vunpack.c.l.b16 %v450
    %v636 = vunpack.c.h.b16 %v450
    %v637 = vunpack.c.l.b16 %v451
    %v638 = vunpack.c.h.b16 %v451
    %v639 = vunpack.c.l.b16 %v452
    %v640 = vunpack.c.h.b16 %v452
    %v641 = vunpack.c.l.b16 %v453
    %v642 = vunpack.c.h.b16 %v453
    %v643 = vunpack.c.l.b16 %v454
    %v644 = vunpack.c.h.b16 %v454
    %v645 = vunpack.c.l.b16 %v455
    %v646 = vunpack.c.h.b16 %v455
    %v647 = vunpack.c.l.b16 %v456
    %v648 = vunpack.c.h.b16 %v456
    %v649 = vunpack.c.l.b16 %v457
    %v650 = vunpack.c.h.b16 %v457
    %v651 = vunpack.c.l.b16 %v458
    %v652 = vunpack.c.h.b16 %v458
    %v653 = vunpack.c.l.b16 %v459
    %v654 = vunpack.c.h.b16 %v459
    %v655 = vunpack.c.l.b16 %v460
    %v656 = vunpack.c.h.b16 %v460
    %v657 = vunpack.c.l.b16 %v461
    %v658 = vunpack.c.h.b16 %v461
    %v659 = vunpack.c.l.b16 %v462
    %v660 = vunpack.c.h.b16 %v462
    %v661 = vunpack.c.l.b16 %v463
    %v662 = vunpack.c.h.b16 %v463
    %v663 = vunpack.c.l.b16 %v464
    %v664 = vunpack.c.h.b16 %v464
    %v665 = vunpack.c.l.b16 %v465
    %v666 = vunpack.c.h.b16 %v465
    %v667 = vunpack.c.l.b16 %v466
    %v668 = vunpack.c.h.b16 %v466
    %v669 = vpack.c.b16 %v545, %v541
    %v670 = vpack.c.b16 %v546, %v542
    %v671 = vpack.c.b16 %v547, %v543
    %v672 = vpack.c.b16 %v548, %v544
    %v673 = vpack.c.b16 %v553, %v549
    %v674 = vpack.c.b16 %v554, %v550
    %v675 = vpack.c.b16 %v555, %v551
    %v676 = vpack.c.b16 %v556, %v552
    %v677 = vpack.c.b16 %v561, %v557
    %v678 = vpack.c.b16 %v562, %v558
    %v679 = vpack.c.b16 %v563, %v559
    %v680 = vpack.c.b16 %v564, %v560
    %v681 = vpack.c.b16 %v569, %v565
    %v682 = vpack.c.b16 %v570, %v566
    %v683 = vpack.c.b16 %v571, %v567
    %v684 = vpack.c.b16 %v572, %v568
    %v685 = vpack.c.b16 %v577, %v573
    %v686 = vpack.c.b16 %v578, %v574
    %v687 = vpack.c.b16 %v579, %v575
    %v688 = vpack.c.b16 %v580, %v576
    %v689 = vpack.c.b16 %v585, %v581
    %v690 = vpack.c.b16 %v586, %v582
    %v691 = vpack.c.b16 %v587, %v583
    %v692 = vpack.c.b16 %v588, %v584
    %v693 = vpack.c.b16 %v593, %v589
    %v694 = vpack.c.b16 %v594, %v590
    %v695 = vpack.c.b16 %v595, %v591
    %v696 = vpack.c.b16 %v596, %v592
    %v697 = vpack.c.b16 %v601, %v597
    %v698 = vpack.c.b16 %v602, %v598
    %v699 = vpack.c.b16 %v603, %v599
    %v700 = vpack.c.b16 %v604, %v600
    %v701 = vpack.c.b16 %v609, %v605
    %v702 = vpack.c.b16 %v610, %v606
    %v703 = vpack.c.b16 %v611, %v607
    %v704 = vpack.c.b16 %v612, %v608
    %v705 = vpack.c.b16 %v617, %v613
    %v706 = vpack.c.b16 %v618, %v614
    %v707 = vpack.c.b16 %v619, %v615
    %v708 = vpack.c.b16 %v620, %v616
    %v709 = vpack.c.b16 %v625, %v621
    %v710 = vpack.c.b16 %v626, %v622
    %v711 = vpack.c.b16 %v627, %v623
    %v712 = vpack.c.b16 %v628, %v624
    %v713 = vpack.c.b16 %v633, %v629
    %v714 = vpack.c.b16 %v634, %v630
    %v715 = vpack.c.b16 %v635, %v631
    %v716 = vpack.c.b16 %v636, %v632
    %v717 = vpack.c.b16 %v641, %v637
    %v718 = vpack.c.b16 %v642, %v638
    %v719 = vpack.c.b16 %v643, %v639
    %v720 = vpack.c.b16 %v644, %v640
    %v721 = vpack.c.b16 %v649, %v645
    %v722 = vpack.c.b16 %v650, %v646
    %v723 = vpack.c.b16 %v651, %v647
    %v724 = vpack.c.b16 %v652, %v648
    %v725 = vpack.c.b16 %v657, %v653
    %v726 = vpack.c.b16 %v658, %v654
    %v727 = vpack.c.b16 %v659, %v655
    %v728 = vpack.c.b16 %v660, %v656
    %v729 = vpack.c.b16 %v665, %v661
    %v730 = vpack.c.b16 %v666, %v662
    %v731 = vpack.c.b16 %v667, %v663
    %v732 = vpack.c.b16 %v668, %v664
    %797 = vmatpush.bf16.msra.mxu0 %v697
    %798 = vmatpush.bf16.msra.mxu0 %v693
    %799 = vmatpush.bf16.msra.mxu0 %v689
    %800 = vmatpush.bf16.msra.mxu0 %v685
    %801 = vmatpush.bf16.msra.mxu0 %v681
    %802 = vmatpush.bf16.msra.mxu0 %v677
    %803 = vmatpush.bf16.msra.mxu0 %v673
    %804 = vmatpush.bf16.msra.mxu0 %v669
    %805 = vmatmul.bf16.gmra.mxu0 %v399
    %v806 = vpop.f32.mrf.mxu0
    %v807 = vadd.f32 %v469, %v806
    %v808 = vpop.f32.mrf.mxu0
    %v809 = vadd.f32 %v469, %v808
    %810 = vmatmul.bf16.gmra.mxu0 %v401
    %v811 = vpop.f32.mrf.mxu0
    %v812 = vadd.f32 %v469, %v811
    %v813 = vpop.f32.mrf.mxu0
    %v814 = vadd.f32 %v469, %v813
    %815 = vdwg.mxu0
    %816 = vmatpush.bf16.msra.mxu0 %v729
    %817 = vmatpush.bf16.msra.mxu0 %v725
    %818 = vmatpush.bf16.msra.mxu0 %v721
    %819 = vmatpush.bf16.msra.mxu0 %v717
    %820 = vmatpush.bf16.msra.mxu0 %v713
    %821 = vmatpush.bf16.msra.mxu0 %v709
    %822 = vmatpush.bf16.msra.mxu0 %v705
    %823 = vmatpush.bf16.msra.mxu0 %v701
    %824 = vmatmul.bf16.gmra.mxu0 %v400
    %v825 = vpop.f32.mrf.mxu0
    %v826 = vadd.f32 %v807, %v825
    %v827 = vpop.f32.mrf.mxu0
    %v828 = vadd.f32 %v809, %v827
    %829 = vmatmul.bf16.gmra.mxu0 %v402
    %v830 = vpop.f32.mrf.mxu0
    %v831 = vadd.f32 %v812, %v830
    %v832 = vpop.f32.mrf.mxu0
    %v833 = vadd.f32 %v814, %v832
    %834 = vdwg.mxu0
    %835 = vmatpush.bf16.msra.mxu0 %v698
    %836 = vmatpush.bf16.msra.mxu0 %v694
    %837 = vmatpush.bf16.msra.mxu0 %v690
    %838 = vmatpush.bf16.msra.mxu0 %v686
    %839 = vmatpush.bf16.msra.mxu0 %v682
    %840 = vmatpush.bf16.msra.mxu0 %v678
    %841 = vmatpush.bf16.msra.mxu0 %v674
    %842 = vmatpush.bf16.msra.mxu0 %v670
    %843 = vmatmul.bf16.gmra.mxu0 %v399
    %v844 = vpop.f32.mrf.mxu0
    %v845 = vadd.f32 %v470, %v844
    %v846 = vpop.f32.mrf.mxu0
    %v847 = vadd.f32 %v470, %v846
    %848 = vmatmul.bf16.gmra.mxu0 %v401
    %v849 = vpop.f32.mrf.mxu0
    %v850 = vadd.f32 %v470, %v849
    %v851 = vpop.f32.mrf.mxu0
    %v852 = vadd.f32 %v470, %v851
    %853 = vdwg.mxu0
    %854 = vmatpush.bf16.msra.mxu0 %v730
    %855 = vmatpush.bf16.msra.mxu0 %v726
    %856 = vmatpush.bf16.msra.mxu0 %v722
    %857 = vmatpush.bf16.msra.mxu0 %v718
    %858 = vmatpush.bf16.msra.mxu0 %v714
    %859 = vmatpush.bf16.msra.mxu0 %v710
    %860 = vmatpush.bf16.msra.mxu0 %v706
    %861 = vmatpush.bf16.msra.mxu0 %v702
    %862 = vmatmul.bf16.gmra.mxu0 %v400
    %v863 = vpop.f32.mrf.mxu0
    %v864 = vadd.f32 %v845, %v863
    %v865 = vpop.f32.mrf.mxu0
    %v866 = vadd.f32 %v847, %v865
    %867 = vmatmul.bf16.gmra.mxu0 %v402
    %v868 = vpop.f32.mrf.mxu0
    %v869 = vadd.f32 %v850, %v868
    %v870 = vpop.f32.mrf.mxu0
    %v871 = vadd.f32 %v852, %v870
    %872 = vdwg.mxu0
    %873 = vmatpush.bf16.msra.mxu0 %v699
    %874 = vmatpush.bf16.msra.mxu0 %v695
    %875 = vmatpush.bf16.msra.mxu0 %v691
    %876 = vmatpush.bf16.msra.mxu0 %v687
    %877 = vmatpush.bf16.msra.mxu0 %v683
    %878 = vmatpush.bf16.msra.mxu0 %v679
    %879 = vmatpush.bf16.msra.mxu0 %v675
    %880 = vmatpush.bf16.msra.mxu0 %v671
    %881 = vmatmul.bf16.gmra.mxu0 %v399
    %v882 = vpop.f32.mrf.mxu0
    %v883 = vadd.f32 %v471, %v882
    %v884 = vpop.f32.mrf.mxu0
    %v885 = vadd.f32 %v471, %v884
    %886 = vmatmul.bf16.gmra.mxu0 %v401
    %v887 = vpop.f32.mrf.mxu0
    %v888 = vadd.f32 %v471, %v887
    %v889 = vpop.f32.mrf.mxu0
    %v890 = vadd.f32 %v471, %v889
    %891 = vdwg.mxu0
    %892 = vmatpush.bf16.msra.mxu0 %v731
    %893 = vmatpush.bf16.msra.mxu0 %v727
    %894 = vmatpush.bf16.msra.mxu0 %v723
    %895 = vmatpush.bf16.msra.mxu0 %v719
    %896 = vmatpush.bf16.msra.mxu0 %v715
    %897 = vmatpush.bf16.msra.mxu0 %v711
    %898 = vmatpush.bf16.msra.mxu0 %v707
    %899 = vmatpush.bf16.msra.mxu0 %v703
    %900 = vmatmul.bf16.gmra.mxu0 %v400
    %v901 = vpop.f32.mrf.mxu0
    %v902 = vadd.f32 %v883, %v901
    %v903 = vpop.f32.mrf.mxu0
    %v904 = vadd.f32 %v885, %v903
    %905 = vmatmul.bf16.gmra.mxu0 %v402
    %v906 = vpop.f32.mrf.mxu0
    %v907 = vadd.f32 %v888, %v906
    %v908 = vpop.f32.mrf.mxu0
    %v909 = vadd.f32 %v890, %v908
    %910 = vdwg.mxu0
    %911 = vmatpush.bf16.msra.mxu0 %v700
    %912 = vmatpush.bf16.msra.mxu0 %v696
    %913 = vmatpush.bf16.msra.mxu0 %v692
    %914 = vmatpush.bf16.msra.mxu0 %v688
    %915 = vmatpush.bf16.msra.mxu0 %v684
    %916 = vmatpush.bf16.msra.mxu0 %v680
    %917 = vmatpush.bf16.msra.mxu0 %v676
    %918 = vmatpush.bf16.msra.mxu0 %v672
    %919 = vmatmul.bf16.gmra.mxu0 %v399
    %v920 = vpop.f32.mrf.mxu0
    %v921 = vadd.f32 %v472, %v920
    %v922 = vpop.f32.mrf.mxu0
    %v923 = vadd.f32 %v472, %v922
    %924 = vmatmul.bf16.gmra.mxu0 %v401
    %v925 = vpop.f32.mrf.mxu0
    %v926 = vadd.f32 %v472, %v925
    %v927 = vpop.f32.mrf.mxu0
    %v928 = vadd.f32 %v472, %v927
    %929 = vdwg.mxu0
    %930 = vmatpush.bf16.msra.mxu0 %v732
    %931 = vmatpush.bf16.msra.mxu0 %v728
    %932 = vmatpush.bf16.msra.mxu0 %v724
    %933 = vmatpush.bf16.msra.mxu0 %v720
    %934 = vmatpush.bf16.msra.mxu0 %v716
    %935 = vmatpush.bf16.msra.mxu0 %v712
    %936 = vmatpush.bf16.msra.mxu0 %v708
    %937 = vmatpush.bf16.msra.mxu0 %v704
    %938 = vmatmul.bf16.gmra.mxu0 %v400
    %v939 = vpop.f32.mrf.mxu0
    %v940 = vadd.f32 %v921, %v939
    %v941 = vpop.f32.mrf.mxu0
    %v942 = vadd.f32 %v923, %v941
    %943 = vmatmul.bf16.gmra.mxu0 %v402
    %v944 = vpop.f32.mrf.mxu0
    %v945 = vadd.f32 %v926, %v944
    %v946 = vpop.f32.mrf.mxu0
    %v947 = vadd.f32 %v928, %v946
    %948 = vdwg.mxu0
    %v949 = vmax.f32 %v826, 0.0
    %v950 = vmax.f32 %v864, 0.0
    %v951 = vmax.f32 %v902, 0.0
    %v952 = vmax.f32 %v940, 0.0
    %v953 = vmax.f32 %v828, 0.0
    %v954 = vmax.f32 %v866, 0.0
    %v955 = vmax.f32 %v904, 0.0
    %v956 = vmax.f32 %v942, 0.0
    %v957 = vmax.f32 %v831, 0.0
    %v958 = vmax.f32 %v869, 0.0
    %v959 = vmax.f32 %v907, 0.0
    %v960 = vmax.f32 %v945, 0.0
    %v961 = vmax.f32 %v833, 0.0
    %v962 = vmax.f32 %v871, 0.0
    %v963 = vmax.f32 %v909, 0.0
    %v964 = vmax.f32 %v947, 0.0
    %v965 = vpack.c.bf16 %v953, %v949
    %v966 = vpack.c.bf16 %v954, %v950
    %v967 = vpack.c.bf16 %v955, %v951
    %v968 = vpack.c.bf16 %v956, %v952
    %v969 = vpack.c.bf16 %v961, %v957
    %v970 = vpack.c.bf16 %v962, %v958
    %v971 = vpack.c.bf16 %v963, %v959
    %v972 = vpack.c.bf16 %v964, %v960
    %v973 = vld [vmem:[#allocation7] sm:$0xf]
    %v974 = vld [vmem:[#allocation7 + $0x4] sm:$0xf]
    %v975 = vld [vmem:[#allocation7 + $0x8] sm:$0xf]
    %v976 = vld [vmem:[#allocation7 + $0xc] sm:$0xf]
    %v977 = vld [vmem:[#allocation7 + $0x10] sm:$0xf]
    %v978 = vld [vmem:[#allocation7 + $0x14] sm:$0xf]
    %v979 = vld [vmem:[#allocation7 + $0x18] sm:$0xf]
    %v980 = vld [vmem:[#allocation7 + $0x1c] sm:$0xf]
    %v981 = vld [vmem:[#allocation7 + $0x20] sm:$0xf]
    %v982 = vld [vmem:[#allocation7 + $0x24] sm:$0xf]
    %v983 = vld [vmem:[#allocation7 + $0x28] sm:$0xf]
    %v984 = vld [vmem:[#allocation7 + $0x2c] sm:$0xf]
    %v985 = vld [vmem:[#allocation7 + $0x30] sm:$0xf]
    %v986 = vld [vmem:[#allocation7 + $0x34] sm:$0xf]
    %v987 = vld [vmem:[#allocation7 + $0x38] sm:$0xf]
    %v988 = vld [vmem:[#allocation7 + $0x3c] sm:$0xf]
    %v989 = vld [vmem:[#allocation7 + $0x40] sm:$0xf]
    %v990 = vld [vmem:[#allocation7 + $0x44] sm:$0xf]
    %v991 = vld [vmem:[#allocation7 + $0x48] sm:$0xf]
    %v992 = vld [vmem:[#allocation7 + $0x4c] sm:$0xf]
    %v993 = vld [vmem:[#allocation7 + $0x50] sm:$0xf]
    %v994 = vld [vmem:[#allocation7 + $0x54] sm:$0xf]
    %v995 = vld [vmem:[#allocation7 + $0x58] sm:$0xf]
    %v996 = vld [vmem:[#allocation7 + $0x5c] sm:$0xf]
    %v997 = vld [vmem:[#allocation7 + $0x60] sm:$0xf]
    %v998 = vld [vmem:[#allocation7 + $0x64] sm:$0xf]
    %v999 = vld [vmem:[#allocation7 + $0x68] sm:$0xf]
    %v1000 = vld [vmem:[#allocation7 + $0x6c] sm:$0xf]
    %v1001 = vld [vmem:[#allocation7 + $0x70] sm:$0xf]
    %v1002 = vld [vmem:[#allocation7 + $0x74] sm:$0xf]
    %v1003 = vld [vmem:[#allocation7 + $0x78] sm:$0xf]
    %v1004 = vld [vmem:[#allocation7 + $0x7c] sm:$0xf]
    %v1005 = vld [vmem:[#allocation7 + $0x80] sm:$0xf]
    %v1006 = vld [vmem:[#allocation7 + $0x84] sm:$0xf]
    %v1007 = vld [vmem:[#allocation7 + $0x88] sm:$0xf]
    %v1008 = vld [vmem:[#allocation7 + $0x8c] sm:$0xf]
    %v1009 = vld [vmem:[#allocation7 + $0x90] sm:$0xf]
    %v1010 = vld [vmem:[#allocation7 + $0x94] sm:$0xf]
    %v1011 = vld [vmem:[#allocation7 + $0x98] sm:$0xf]
    %v1012 = vld [vmem:[#allocation7 + $0x9c] sm:$0xf]
    %v1013 = vld [vmem:[#allocation7 + $0xa0] sm:$0xf]
    %v1014 = vld [vmem:[#allocation7 + $0xa4] sm:$0xf]
    %v1015 = vld [vmem:[#allocation7 + $0xa8] sm:$0xf]
    %v1016 = vld [vmem:[#allocation7 + $0xac] sm:$0xf]
    %v1017 = vld [vmem:[#allocation7 + $0xb0] sm:$0xf]
    %v1018 = vld [vmem:[#allocation7 + $0xb4] sm:$0xf]
    %v1019 = vld [vmem:[#allocation7 + $0xb8] sm:$0xf]
    %v1020 = vld [vmem:[#allocation7 + $0xbc] sm:$0xf]
    %v1021 = vld [vmem:[#allocation7 + $0xc0] sm:$0xf]
    %v1022 = vld [vmem:[#allocation7 + $0xc4] sm:$0xf]
    %v1023 = vld [vmem:[#allocation7 + $0xc8] sm:$0xf]
    %v1024 = vld [vmem:[#allocation7 + $0xcc] sm:$0xf]
    %v1025 = vld [vmem:[#allocation7 + $0xd0] sm:$0xf]
    %v1026 = vld [vmem:[#allocation7 + $0xd4] sm:$0xf]
    %v1027 = vld [vmem:[#allocation7 + $0xd8] sm:$0xf]
    %v1028 = vld [vmem:[#allocation7 + $0xdc] sm:$0xf]
    %v1029 = vld [vmem:[#allocation7 + $0xe0] sm:$0xf]
    %v1030 = vld [vmem:[#allocation7 + $0xe4] sm:$0xf]
    %v1031 = vld [vmem:[#allocation7 + $0xe8] sm:$0xf]
    %v1032 = vld [vmem:[#allocation7 + $0xec] sm:$0xf]
    %v1033 = vld [vmem:[#allocation7 + $0xf0] sm:$0xf]
    %v1034 = vld [vmem:[#allocation7 + $0xf4] sm:$0xf]
    %v1035 = vld [vmem:[#allocation7 + $0xf8] sm:$0xf]
    %v1036 = vld [vmem:[#allocation7 + $0xfc] sm:$0xf]
    %v1037 = vld [vmem:[%s10] sm:$0x1]
    %v1039 = vperm.slane %v1037, 0
    %v1105 = vunpack.c.l.b16 %v973
    %v1106 = vunpack.c.l.b16 %v974
    %v1107 = vunpack.c.l.b16 %v975
    %v1108 = vunpack.c.l.b16 %v976
    %v1109 = vunpack.c.l.b16 %v977
    %v1110 = vunpack.c.l.b16 %v978
    %v1111 = vunpack.c.l.b16 %v979
    %v1112 = vunpack.c.l.b16 %v980
    %v1113 = vunpack.c.l.b16 %v981
    %v1114 = vunpack.c.l.b16 %v982
    %v1115 = vunpack.c.l.b16 %v983
    %v1116 = vunpack.c.l.b16 %v984
    %v1117 = vunpack.c.l.b16 %v985
    %v1118 = vunpack.c.l.b16 %v986
    %v1119 = vunpack.c.l.b16 %v987
    %v1120 = vunpack.c.l.b16 %v988
    %v1121 = vunpack.c.l.b16 %v989
    %v1122 = vunpack.c.l.b16 %v990
    %v1123 = vunpack.c.l.b16 %v991
    %v1124 = vunpack.c.l.b16 %v992
    %v1125 = vunpack.c.l.b16 %v993
    %v1126 = vunpack.c.l.b16 %v994
    %v1127 = vunpack.c.l.b16 %v995
    %v1128 = vunpack.c.l.b16 %v996
    %v1129 = vunpack.c.l.b16 %v997
    %v1130 = vunpack.c.l.b16 %v998
    %v1131 = vunpack.c.l.b16 %v999
    %v1132 = vunpack.c.l.b16 %v1000
    %v1133 = vunpack.c.l.b16 %v1001
    %v1134 = vunpack.c.l.b16 %v1002
    %v1135 = vunpack.c.l.b16 %v1003
    %v1136 = vunpack.c.l.b16 %v1004
    %v1137 = vunpack.c.l.b16 %v1005
    %v1138 = vunpack.c.l.b16 %v1006
    %v1139 = vunpack.c.l.b16 %v1007
    %v1140 = vunpack.c.l.b16 %v1008
    %v1141 = vunpack.c.l.b16 %v1009
    %v1142 = vunpack.c.l.b16 %v1010
    %v1143 = vunpack.c.l.b16 %v1011
    %v1144 = vunpack.c.l.b16 %v1012
    %v1145 = vunpack.c.l.b16 %v1013
    %v1146 = vunpack.c.l.b16 %v1014
    %v1147 = vunpack.c.l.b16 %v1015
    %v1148 = vunpack.c.l.b16 %v1016
    %v1149 = vunpack.c.l.b16 %v1017
    %v1150 = vunpack.c.l.b16 %v1018
    %v1151 = vunpack.c.l.b16 %v1019
    %v1152 = vunpack.c.l.b16 %v1020
    %v1153 = vunpack.c.l.b16 %v1021
    %v1154 = vunpack.c.l.b16 %v1022
    %v1155 = vunpack.c.l.b16 %v1023
    %v1156 = vunpack.c.l.b16 %v1024
    %v1157 = vunpack.c.l.b16 %v1025
    %v1158 = vunpack.c.l.b16 %v1026
    %v1159 = vunpack.c.l.b16 %v1027
    %v1160 = vunpack.c.l.b16 %v1028
    %v1161 = vunpack.c.l.b16 %v1029
    %v1162 = vunpack.c.l.b16 %v1030
    %v1163 = vunpack.c.l.b16 %v1031
    %v1164 = vunpack.c.l.b16 %v1032
    %v1165 = vunpack.c.l.b16 %v1033
    %v1166 = vunpack.c.l.b16 %v1034
    %v1167 = vunpack.c.l.b16 %v1035
    %v1168 = vunpack.c.l.b16 %v1036
    %v1169 = vpack.c.b16 %v1106, %v1105
    %v1170 = vpack.c.b16 %v1108, %v1107
    %v1171 = vpack.c.b16 %v1110, %v1109
    %v1172 = vpack.c.b16 %v1112, %v1111
    %v1173 = vpack.c.b16 %v1114, %v1113
    %v1174 = vpack.c.b16 %v1116, %v1115
    %v1175 = vpack.c.b16 %v1118, %v1117
    %v1176 = vpack.c.b16 %v1120, %v1119
    %v1177 = vpack.c.b16 %v1122, %v1121
    %v1178 = vpack.c.b16 %v1124, %v1123
    %v1179 = vpack.c.b16 %v1126, %v1125
    %v1180 = vpack.c.b16 %v1128, %v1127
    %v1181 = vpack.c.b16 %v1130, %v1129
    %v1182 = vpack.c.b16 %v1132, %v1131
    %v1183 = vpack.c.b16 %v1134, %v1133
    %v1184 = vpack.c.b16 %v1136, %v1135
    %v1185 = vpack.c.b16 %v1138, %v1137
    %v1186 = vpack.c.b16 %v1140, %v1139
    %v1187 = vpack.c.b16 %v1142, %v1141
    %v1188 = vpack.c.b16 %v1144, %v1143
    %v1189 = vpack.c.b16 %v1146, %v1145
    %v1190 = vpack.c.b16 %v1148, %v1147
    %v1191 = vpack.c.b16 %v1150, %v1149
    %v1192 = vpack.c.b16 %v1152, %v1151
    %v1193 = vpack.c.b16 %v1154, %v1153
    %v1194 = vpack.c.b16 %v1156, %v1155
    %v1195 = vpack.c.b16 %v1158, %v1157
    %v1196 = vpack.c.b16 %v1160, %v1159
    %v1197 = vpack.c.b16 %v1162, %v1161
    %v1198 = vpack.c.b16 %v1164, %v1163
    %v1199 = vpack.c.b16 %v1166, %v1165
    %v1200 = vpack.c.b16 %v1168, %v1167
    %1233 = vmatpush.bf16.msra.mxu0 %v1176
    %1234 = vmatpush.bf16.msra.mxu0 %v1175
    %1235 = vmatpush.bf16.msra.mxu0 %v1174
    %1236 = vmatpush.bf16.msra.mxu0 %v1173
    %1237 = vmatpush.bf16.msra.mxu0 %v1172
    %1238 = vmatpush.bf16.msra.mxu0 %v1171
    %1239 = vmatpush.bf16.msra.mxu0 %v1170
    %1240 = vmatpush.bf16.msra.mxu0 %v1169
    %1241 = vmatmul.bf16.gmra.mxu0 %v965
    %v1242 = vpop.f32.mrf.mxu0
    %v1243 = vadd.f32 %v1039, %v1242
    %v1244 = vpop.f32.mrf.mxu0
    %v1245 = vadd.f32 %v1039, %v1244
    %1246 = vmatmul.bf16.gmra.mxu0 %v969
    %v1247 = vpop.f32.mrf.mxu0
    %v1248 = vadd.f32 %v1039, %v1247
    %v1249 = vpop.f32.mrf.mxu0
    %v1250 = vadd.f32 %v1039, %v1249
    %1251 = vdwg.mxu0
    %1252 = vmatpush.bf16.msra.mxu0 %v1184
    %1253 = vmatpush.bf16.msra.mxu0 %v1183
    %1254 = vmatpush.bf16.msra.mxu0 %v1182
    %1255 = vmatpush.bf16.msra.mxu0 %v1181
    %1256 = vmatpush.bf16.msra.mxu0 %v1180
    %1257 = vmatpush.bf16.msra.mxu0 %v1179
    %1258 = vmatpush.bf16.msra.mxu0 %v1178
    %1259 = vmatpush.bf16.msra.mxu0 %v1177
    %1260 = vmatmul.bf16.gmra.mxu0 %v966
    %v1261 = vpop.f32.mrf.mxu0
    %v1262 = vadd.f32 %v1243, %v1261
    %v1263 = vpop.f32.mrf.mxu0
    %v1264 = vadd.f32 %v1245, %v1263
    %1265 = vmatmul.bf16.gmra.mxu0 %v970
    %v1266 = vpop.f32.mrf.mxu0
    %v1267 = vadd.f32 %v1248, %v1266
    %v1268 = vpop.f32.mrf.mxu0
    %v1269 = vadd.f32 %v1250, %v1268
    %1270 = vdwg.mxu0
    %1271 = vmatpush.bf16.msra.mxu0 %v1192
    %1272 = vmatpush.bf16.msra.mxu0 %v1191
    %1273 = vmatpush.bf16.msra.mxu0 %v1190
    %1274 = vmatpush.bf16.msra.mxu0 %v1189
    %1275 = vmatpush.bf16.msra.mxu0 %v1188
    %1276 = vmatpush.bf16.msra.mxu0 %v1187
    %1277 = vmatpush.bf16.msra.mxu0 %v1186
    %1278 = vmatpush.bf16.msra.mxu0 %v1185
    %1279 = vmatmul.bf16.gmra.mxu0 %v967
    %v1280 = vpop.f32.mrf.mxu0
    %v1281 = vadd.f32 %v1262, %v1280
    %v1282 = vpop.f32.mrf.mxu0
    %v1283 = vadd.f32 %v1264, %v1282
    %1284 = vmatmul.bf16.gmra.mxu0 %v971
    %v1285 = vpop.f32.mrf.mxu0
    %v1286 = vadd.f32 %v1267, %v1285
    %v1287 = vpop.f32.mrf.mxu0
    %v1288 = vadd.f32 %v1269, %v1287
    %1289 = vdwg.mxu0
    %1290 = vmatpush.bf16.msra.mxu0 %v1200
    %1291 = vmatpush.bf16.msra.mxu0 %v1199
    %1292 = vmatpush.bf16.msra.mxu0 %v1198
    %1293 = vmatpush.bf16.msra.mxu0 %v1197
    %1294 = vmatpush.bf16.msra.mxu0 %v1196
    %1295 = vmatpush.bf16.msra.mxu0 %v1195
    %1296 = vmatpush.bf16.msra.mxu0 %v1194
    %1297 = vmatpush.bf16.msra.mxu0 %v1193
    %1298 = vmatmul.bf16.gmra.mxu0 %v968
    %v1299 = vpop.f32.mrf.mxu0
    %v1300 = vadd.f32 %v1281, %v1299
    %v1301 = vpop.f32.mrf.mxu0
    %v1302 = vadd.f32 %v1283, %v1301
    %1303 = vmatmul.bf16.gmra.mxu0 %v972
    %v1304 = vpop.f32.mrf.mxu0
    %v1305 = vadd.f32 %v1286, %v1304
    %v1306 = vpop.f32.mrf.mxu0
    %v1307 = vadd.f32 %v1288, %v1306
    %1308 = vdwg.mxu0
    %v1309 = vmax.f32 %v1300, 0.0
    %v1310 = vmax.f32 %v1302, 0.0
    %v1311 = vmax.f32 %v1305, 0.0
    %v1312 = vmax.f32 %v1307, 0.0
    %v1313 = vmax.f32 %v1309, %v1310
    %v1314 = vrot.slane %v1313, 4
    %v1315 = vmax.f32 %v1313, %v1314
    %v1316 = vrot.slane %v1315, 2
    %v1317 = vmax.f32 %v1315, %v1316
    %v1318 = vrot.slane %v1317, 1
    %v1319 = vmax.f32 %v1317, %v1318
    %v1320 = vmax.f32 %v1311, %v1312
    %v1321 = vrot.slane %v1320, 4
    %v1322 = vmax.f32 %v1320, %v1321
    %v1323 = vrot.slane %v1322, 2
    %v1324 = vmax.f32 %v1322, %v1323
    %v1325 = vrot.slane %v1324, 1
    %v1326 = vmax.f32 %v1324, %v1325
    %p1327 = scmp.eq.s32.totalorder 0, 0
    // Predicated region
    $region58: #{tpu_custom_call.1} parent=1 // pred_check
      %p1328 = pneg %p1327
    $region59: #{tpu_custom_call.1} parent=1 // pred_check_branch
      %1330 = sbr.rel (%p1328) target = $region61
    $region60: #{tpu_custom_call.1} parent=1 // pred_region
      %1331 = vst [vmem:[#allocation8] sm:$0x1] %v1319
      %1332 = vst [vmem:[#allocation8 + $0x1] sm:$0x1] %v1326
    $region61: #{tpu_custom_call.1} parent=1 // pred_fallthru
      _
    %p1333 = scmp.gt.s32.totalorder 0, 0
    // Predicated region
    $region62: #{tpu_custom_call.1} parent=1 // pred_check
      %p1334 = pneg %p1333
    $region63: #{tpu_custom_call.1} parent=1 // pred_check_branch
      %1336 = sbr.rel (%p1334) target = $region65
    $region64: #{tpu_custom_call.1} parent=1 // pred_region
      %v1337 = vld [vmem:[#allocation8] sm:$0x1]
      %v1338 = vld [vmem:[#allocation8 + $0x1] sm:$0x1]
      %v1339 = vmax.f32 %v1337, %v1319
      %v1340 = vmax.f32 %v1338, %v1326
      %1341 = vst [vmem:[#allocation8] sm:$0x1] %v1339
      %1342 = vst [vmem:[#allocation8 + $0x1] sm:$0x1] %v1340
    $region65: #{tpu_custom_call.1} parent=1 // pred_fallthru
      _
    // Predicated region
    $region66: #{tpu_custom_call.1} parent=1 // pred_check
      _
    $region67: #{tpu_custom_call.1} parent=1 // pred_check_branch
      %1344 = sbr.rel (0) target = $region69
    $region68: #{tpu_custom_call.1} parent=1 // pred_region
      %1346 = vsyncadd [#allocation4], 0
      %s1347 = sshll.u32 [#allocation8], 4
      %s1348 = int_to_ptr.vmem [resolvable:$true] %s1347
      %s1349 = sshll.u32 %s11, 4
      %s1350 = int_to_ptr.hbm [resolvable:$true] %s1349
      %1355 = dma.vmem_to_hbm [thread:$0]  %s1348, 32, %s1350, [#allocation4], 16, 16, 1
    $region69: #{tpu_custom_call.1} parent=1 // pred_fallthru
      _
    // Predicated region
    $region70: #{tpu_custom_call.1} parent=1 // pred_check
      _
    $region71: #{tpu_custom_call.1} parent=1 // pred_check_branch
      %1357 = sbr.rel (0) target = $region73
    $region72: #{tpu_custom_call.1} parent=1 // pred_region
      %1359 = dma.done [#allocation4], 32
    $region73: #{tpu_custom_call.1} parent=1 // pred_fallthru
      _
    %1360 = vsyncpa [#allocation3], 1
    %1361 = vsyncpa [#allocation6], 1
    %1362 = vsyncpa [#allocation4], 1

</llo_original>
